<compile_context>
chip_gen: v7x
topology: tpu7x:2x2x1
jax: 0.10.0
libtpu: 0.0.40
codegen_flags: <defaults>
</compile_context>

<pallas_src>
import functools
from math import log, ceil, floor

import jax
import jax.numpy as jnp
from jax import lax
from jax.experimental import pallas as pl
from jax.experimental.pallas import tpu as pltpu


_VMEM_LIMIT = 32 * 1024 * 1024  # fits every generation incl. v7x (64 MiB phys)


# ---------------------------------------------------------------------------
# Tiling helper
# ---------------------------------------------------------------------------
def _pick_hw_tile(hw, batch):
    """Largest lane-dense divisor of H*W that still leaves >=4 grid steps."""
    candidates = [t for t in (4096, 2048, 1024, 512, 256, 128) if hw % t == 0]
    if not candidates:
        return hw                               # small / odd H*W: one full block
    for t in candidates:                        # largest first
        if batch * (hw // t) >= 4:              # keep both v7x TCs busy + pipeline
            return t
    return candidates[-1]


# ---------------------------------------------------------------------------
# Pallas kernel 1: fused conv_3 + conv_1 over E  (NCHW-native, channels on
# sublanes, H*W on lanes).  Also accumulates the spatial-branch mean pool of
# conv_3(E) in-kernel so that slab never hits HBM.
#   y rows 0..ci-1  = conv_3 output (e3)      -> pooled sum accumulator
#   y row  ci       = conv_1 output (e1)      -> (B, 1, HW) lane-dense output
# ---------------------------------------------------------------------------
def _e_branch_kernel(x_ref, w1t_ref, b1_ref, w2t_ref, b2_ref,
                     e1_ref, pool_ref, *, ci):
    t = pl.program_id(1)
    x = x_ref[0]                                                  # (cin, thw)
    h = jnp.dot(w1t_ref[...], x, preferred_element_type=jnp.float32)
    h = jnp.maximum(h + b1_ref[...], 0.0)                         # (2ci, thw)
    y = jnp.dot(w2t_ref[...], h, preferred_element_type=jnp.float32)
    y = jnp.maximum(y + b2_ref[...], 0.0)                         # (ci+1, thw)

    e1_ref[0] = y[ci:ci + 1, :]                                   # lane-dense row

    @pl.when(t == 0)
    def _():
        pool_ref[...] = jnp.zeros_like(pool_ref)
    pool_ref[0] = pool_ref[0] + jnp.sum(y[:ci, :], axis=-1, keepdims=True)


def _run_e_branch(e_flat, w1t, b1, w2t, b2, ci):
    B, cin, HW = e_flat.shape
    thw = _pick_hw_tile(HW, B)
    n_hw = HW // thw
    c2 = 2 * ci
    cout = ci + 1
    flops = 2 * B * HW * (cin * c2 + c2 * cout) + B * HW * ci
    wbytes = 4 * (c2 * cin + c2 + cout * c2 + cout)
    bytes_acc = 4 * (B * cin * HW + B * HW + B * ci) + wbytes * B * n_hw

    return pl.pallas_call(
        functools.partial(_e_branch_kernel, ci=ci),
        out_shape=(jax.ShapeDtypeStruct((B, 1, HW), jnp.float32),
                   jax.ShapeDtypeStruct((B, ci, 1), jnp.float32)),
        grid=(B, n_hw),
        in_specs=[
            pl.BlockSpec((1, cin, thw), lambda b, t: (b, 0, t)),
            pl.BlockSpec((c2, cin), lambda b, t: (0, 0)),
            pl.BlockSpec((c2, 1), lambda b, t: (0, 0)),
            pl.BlockSpec((cout, c2), lambda b, t: (0, 0)),
            pl.BlockSpec((cout, 1), lambda b, t: (0, 0)),
        ],
        out_specs=(
            pl.BlockSpec((1, 1, thw), lambda b, t: (b, 0, t)),
            pl.BlockSpec((1, ci, 1), lambda b, t: (b, 0, 0)),   # resident accumulator
        ),
        compiler_params=pltpu.CompilerParams(
            dimension_semantics=("parallel", "arbitrary"),
            vmem_limit_bytes=_VMEM_LIMIT),
        cost_estimate=pl.CostEstimate(flops=int(flops), transcendentals=0,
                                      bytes_accessed=int(bytes_acc)),
    )(e_flat, w1t, b1, w2t, b2)


# ---------------------------------------------------------------------------
# Pallas kernel 2: fused conv_4 + conv_2 over D.  Also accumulates the
# channel-branch context = sum_p conv_2(D)[:, :, p] * softmax(conv_1(E))[:, p]
# in-kernel (conv_2(D) never hits HBM); conv_4(D) is emitted lane-dense.
#   y rows 0..ci-1   = conv_4 output (d4)   -> (B, ci, HW) output
#   y rows ci..2ci-1 = conv_2 output (d2)   -> context accumulator
# ---------------------------------------------------------------------------
def _d_branch_kernel(x_ref, attn_ref, w1t_ref, b1_ref, w2t_ref, b2_ref,
                     d4_ref, ctx_ref, *, ci):
    t = pl.program_id(1)
    x = x_ref[0]                                                  # (cin, thw)
    h = jnp.dot(w1t_ref[...], x, preferred_element_type=jnp.float32)
    h = jnp.maximum(h + b1_ref[...], 0.0)                         # (2ci, thw)
    y = jnp.dot(w2t_ref[...], h, preferred_element_type=jnp.float32)
    y = jnp.maximum(y + b2_ref[...], 0.0)                         # (2ci, thw)

    d4_ref[0] = y[:ci, :]

    @pl.when(t == 0)
    def _():
        ctx_ref[...] = jnp.zeros_like(ctx_ref)
    ctx_ref[0] = ctx_ref[0] + jnp.sum(y[ci:, :] * attn_ref[0],
                                      axis=-1, keepdims=True)


def _run_d_branch(d_flat, attn, w1t, b1, w2t, b2, ci):
    B, cin, HW = d_flat.shape
    thw = _pick_hw_tile(HW, B)
    n_hw = HW // thw
    c2 = 2 * ci
    flops = 2 * B * HW * (cin * c2 + c2 * c2) + 2 * B * HW * ci
    wbytes = 4 * (c2 * cin + c2 + c2 * c2 + c2)
    bytes_acc = (4 * (B * cin * HW + B * HW + B * ci * HW + B * ci)
                 + wbytes * B * n_hw)

    return pl.pallas_call(
        functools.partial(_d_branch_kernel, ci=ci),
        out_shape=(jax.ShapeDtypeStruct((B, ci, HW), jnp.float32),
                   jax.ShapeDtypeStruct((B, ci, 1), jnp.float32)),
        grid=(B, n_hw),
        in_specs=[
            pl.BlockSpec((1, cin, thw), lambda b, t: (b, 0, t)),
            pl.BlockSpec((1, 1, thw), lambda b, t: (b, 0, t)),
            pl.BlockSpec((c2, cin), lambda b, t: (0, 0)),
            pl.BlockSpec((c2, 1), lambda b, t: (0, 0)),
            pl.BlockSpec((c2, c2), lambda b, t: (0, 0)),
            pl.BlockSpec((c2, 1), lambda b, t: (0, 0)),
        ],
        out_specs=(
            pl.BlockSpec((1, ci, thw), lambda b, t: (b, 0, t)),
            pl.BlockSpec((1, ci, 1), lambda b, t: (b, 0, 0)),   # resident accumulator
        ),
        compiler_params=pltpu.CompilerParams(
            dimension_semantics=("parallel", "arbitrary"),
            vmem_limit_bytes=_VMEM_LIMIT),
        cost_estimate=pl.CostEstimate(flops=int(flops), transcendentals=0,
                                      bytes_accessed=int(bytes_acc)),
    )(d_flat, attn, w1t, b1, w2t, b2)


# ---------------------------------------------------------------------------
# Pallas kernel 3: AOCL — ONE batched call for both gate vectors.
# Repeated shared 1-D convs folded into a single Toeplitz power T^num_convs.
# ---------------------------------------------------------------------------
def _aocl_kernel(x_ref, t_ref, o_ref):
    x = x_ref[...]
    h = jnp.dot(x, t_ref[...], preferred_element_type=jnp.float32)
    o_ref[...] = x + jax.nn.sigmoid(h)


class AOCLPallas:
    """ECA-style channel attention: repeated shared 1-D conv over the channel
    axis of a pooled descriptor, sigmoid gate, residual add."""

    def __init__(self, channel, n=2, b=2, inter="ceil", key=None):
        assert inter in ("ceil", "floor")   # fixed precedence bug of torch code
        kernel_size = int(abs((log(channel, 2) + 1) / 2))
        self.kernel_size = kernel_size if kernel_size % 2 else kernel_size + 1
        layer_size = 1 + (log(channel, 2) - b) / (2 * n)
        self.layer_size = ceil(layer_size) if inter == "ceil" else floor(layer_size)
        self.channel = channel
        self.pad = self.kernel_size // 2
        self.num_convs = 1 + self.layer_size

        if key is None:
            key = jax.random.PRNGKey(0)
        self.weight = (jax.random.normal(key, (self.kernel_size,), jnp.float32)
                       / jnp.sqrt(jnp.float32(self.kernel_size)))

        # Toeplitz T with (x @ T)[b, c] == conv1d_same_zero_pad(x)[b, c].
        C, K, p = channel, self.kernel_size, self.pad
        j = jnp.arange(C)[:, None]
        c = jnp.arange(C)[None, :]
        k = j - c + p
        valid = (k >= 0) & (k < K)
        toeplitz = jnp.where(valid, self.weight[jnp.clip(k, 0, K - 1)],
                             jnp.float32(0.0))
        t_total = toeplitz
        for _ in range(self.num_convs - 1):
            t_total = jnp.dot(t_total, toeplitz, precision=lax.Precision.HIGHEST)
        self.t_total = t_total

    def __call__(self, x2d):
        # x2d: (N, C) — all gate vectors stacked into one call.
        N, C = x2d.shape
        assert C == self.channel
        return pl.pallas_call(
            _aocl_kernel,
            out_shape=jax.ShapeDtypeStruct((N, C), x2d.dtype),
            compiler_params=pltpu.CompilerParams(vmem_limit_bytes=_VMEM_LIMIT),
            cost_estimate=pl.CostEstimate(
                flops=int(2 * N * C * C), transcendentals=int(N * C),
                bytes_accessed=int(4 * (2 * N * C + C * C))),
        )(x2d, self.t_total)


# ---------------------------------------------------------------------------
# Plain-JAX glue helpers (tiny ops — XLA fuses these)
# ---------------------------------------------------------------------------
def _layer_norm_affine(x, gamma, beta, eps=1e-5):
    mu = jnp.mean(x, axis=-1, keepdims=True)
    var = jnp.mean((x - mu) ** 2, axis=-1, keepdims=True)
    return (x - mu) * lax.rsqrt(var + eps) * gamma + beta


def _layer_norm_nogain(x, eps=1e-5):
    ax = tuple(range(1, x.ndim))
    mu = jnp.mean(x, axis=ax, keepdims=True)
    var = jnp.mean((x - mu) ** 2, axis=ax, keepdims=True)
    return (x - mu) * lax.rsqrt(var + eps)


def _kaiming(key, c_in, c_out):
    return jax.random.normal(key, (c_in, c_out), jnp.float32) * jnp.sqrt(2.0 / c_in)


def _bn_affine(key, c):
    k1, k2 = jax.random.split(key)
    scale = 1.0 + 0.1 * jax.random.normal(k1, (1, c), jnp.float32)
    bias = 0.1 * jax.random.normal(k2, (1, c), jnp.float32)
    return scale, bias


# ---------------------------------------------------------------------------
# AODF module
# ---------------------------------------------------------------------------
class AODFPallas:
    def __init__(self, in_channel, out_channel, key, kernel_size=1, stride=1):
        assert kernel_size == 1 and stride == 1
        self.in_channel = in_channel
        self.inter_channel = in_channel // 2
        self.out_channel = out_channel
        ratio = 4
        cin, ci = in_channel, self.inter_channel
        cr = ci // ratio
        keys = jax.random.split(key, 20)

        def dpw_params(k, c_in, c_mid, c_out):
            ks = jax.random.split(k, 4)
            w1 = _kaiming(ks[0], c_in, c_mid)
            s1, b1 = _bn_affine(ks[1], c_mid)
            w2 = _kaiming(ks[2], c_mid, c_out)
            s2, b2 = _bn_affine(ks[3], c_out)
            return dict(w1=w1, s1=s1, b1=b1, w2=w2, s2=s2, b2=b2)

        # Original (unfused) parameters — used by the pure-JAX reference.
        self.conv_1 = dpw_params(keys[0], cin, ci, 1)
        self.conv_2 = dpw_params(keys[1], cin, ci, ci)
        self.conv_3 = dpw_params(keys[2], cin, ci, ci)
        self.conv_4 = dpw_params(keys[3], cin, ci, ci)

        def fold_t(p, stage):
            # (c_in, c_out) weight * per-output-channel BN scale, transposed to
            # (c_out, c_in) for channels-on-sublanes matmuls.  Exact fold.
            return (p["w" + stage] * p["s" + stage]).T

        def bias_col(p, stage):
            return p["b" + stage].reshape(-1, 1)

        # Fused E kernel params (conv_3 rows 0..ci-1, conv_1 row ci).
        self.e_w1t = jnp.concatenate([fold_t(self.conv_3, "1"),
                                      fold_t(self.conv_1, "1")], axis=0)   # (2ci, cin)
        self.e_b1 = jnp.concatenate([bias_col(self.conv_3, "1"),
                                     bias_col(self.conv_1, "1")], axis=0)  # (2ci, 1)
        w2t_e = jnp.zeros((ci + 1, 2 * ci), jnp.float32)
        w2t_e = w2t_e.at[:ci, :ci].set(fold_t(self.conv_3, "2"))
        w2t_e = w2t_e.at[ci:, ci:].set(fold_t(self.conv_1, "2"))
        self.e_w2t = w2t_e                                                 # block-diag
        self.e_b2 = jnp.concatenate([bias_col(self.conv_3, "2"),
                                     bias_col(self.conv_1, "2")], axis=0)  # (ci+1, 1)

        # Fused D kernel params (conv_4 rows 0..ci-1, conv_2 rows ci..2ci-1).
        self.d_w1t = jnp.concatenate([fold_t(self.conv_4, "1"),
                                      fold_t(self.conv_2, "1")], axis=0)
        self.d_b1 = jnp.concatenate([bias_col(self.conv_4, "1"),
                                     bias_col(self.conv_2, "1")], axis=0)
        w2t_d = jnp.zeros((2 * ci, 2 * ci), jnp.float32)
        w2t_d = w2t_d.at[:ci, :ci].set(fold_t(self.conv_4, "2"))
        w2t_d = w2t_d.at[ci:, ci:].set(fold_t(self.conv_2, "2"))
        self.d_w2t = w2t_d
        self.d_b2 = jnp.concatenate([bias_col(self.conv_4, "2"),
                                     bias_col(self.conv_2, "2")], axis=0)

        # conv_up: 1x1 conv(+bias) -> LayerNorm(cr) -> ReLU -> 1x1 conv(+bias)
        #          -> LayerNorm(cin)
        self.up_w1 = _kaiming(keys[4], ci, cr)
        self.up_b1 = 0.1 * jax.random.normal(keys[5], (cr,), jnp.float32)
        self.up_g1 = 1.0 + 0.1 * jax.random.normal(keys[6], (cr,), jnp.float32)
        self.up_be1 = 0.1 * jax.random.normal(keys[7], (cr,), jnp.float32)
        self.up_w2 = _kaiming(keys[8], cr, cin)
        self.up_b2 = 0.1 * jax.random.normal(keys[9], (cin,), jnp.float32)
        self.up_g2 = 1.0 + 0.1 * jax.random.normal(keys[10], (cin,), jnp.float32)
        self.up_be2 = 0.1 * jax.random.normal(keys[11], (cin,), jnp.float32)

        # out: 3x3 conv(+bias) -> BN affine -> ReLU.
        self.out_w = (jax.random.normal(keys[12], (out_channel, cin, 3, 3), jnp.float32)
                      * jnp.sqrt(2.0 / (cin * 9)))
        self.out_w_hwio = jnp.transpose(self.out_w, (2, 3, 1, 0))   # channels-last
        self.out_b = jnp.zeros((out_channel,), jnp.float32)
        self.out_s = 1.0 + 0.1 * jax.random.normal(keys[13], (out_channel,), jnp.float32)
        self.out_bb = 0.1 * jax.random.normal(keys[14], (out_channel,), jnp.float32)

        self.aocl = AOCLPallas(ci, key=keys[15])

    # ----- tiny shared tail (identical in main & reference paths) ----------
    def _conv_up(self, context):
        hp = lax.Precision.HIGHEST
        h = jnp.dot(context, self.up_w1, precision=hp) + self.up_b1
        h = jnp.maximum(_layer_norm_affine(h, self.up_g1, self.up_be1), 0.0)
        h = jnp.dot(h, self.up_w2, precision=hp) + self.up_b2
        return _layer_norm_affine(h, self.up_g2, self.up_be2)

    # ----- main (Pallas) forward -------------------------------------------
    def __call__(self, E, D):
        B, cin, H, W = E.shape
        assert cin == self.in_channel and D.shape == E.shape
        ci = self.inter_channel
        HW = H * W
        e_flat = E.reshape(B, cin, HW)        # pure reshape, no data movement
        d_flat = D.reshape(B, cin, HW)

        # Fused conv_3/conv_1 over E; e3 mean-pool reduced in-kernel.
        e1, pooled_sum = _run_e_branch(e_flat, self.e_w1t, self.e_b1,
                                       self.e_w2t, self.e_b2, ci)
        attn = jax.nn.softmax(e1.reshape(B, HW), axis=-1)              # (B, HW)
        pooled = pooled_sum.reshape(B, ci) * (1.0 / HW)                # avg pool

        # Fused conv_4/conv_2 over D; channel-branch context reduced in-kernel.
        d4, ctx_sum = _run_d_branch(d_flat, attn.reshape(B, 1, HW),
                                    self.d_w1t, self.d_b1,
                                    self.d_w2t, self.d_b2, ci)
        context = ctx_sum.reshape(B, ci)

        # One batched AOCL call for both gate vectors.
        gated = self.aocl(jnp.concatenate([pooled, context], axis=0))   # (2B, ci)
        a = jax.nn.softmax(gated[:B], axis=-1)                          # spatial gate
        gate = jax.nn.sigmoid(self._conv_up(gated[B:]))                 # channel gate

        # Spatial-branch tail.
        ctx = jnp.einsum("bc,bcp->bp", a, d4,
                         precision=lax.Precision.HIGHEST).reshape(B, 1, H, W)
        out_sp = E * jax.nn.sigmoid(_layer_norm_nogain(ctx)) + E
        # Channel-branch tail.
        out_ch = D * gate[:, :, None, None] + E

        x = out_sp + out_ch
        # 3x3 conv in channels-last form -> BN affine -> ReLU.
        x_nhwc = jnp.transpose(x, (0, 2, 3, 1))
        y = lax.conv_general_dilated(
            x_nhwc, self.out_w_hwio, window_strides=(1, 1),
            padding=((1, 1), (1, 1)),
            dimension_numbers=("NHWC", "HWIO", "NHWC"),
            precision=lax.Precision.HIGHEST)
        y = jnp.maximum((y + self.out_b) * self.out_s + self.out_bb, 0.0)
        return jnp.transpose(y, (0, 3, 1, 2))

    # ----- pure-JAX reference (mirrors the torch forward) -------------------
    def reference(self, E, D):
        hp = lax.Precision.HIGHEST
        B, cin, H, W = E.shape
        ci = self.inter_channel
        HW = H * W

        def dpw_ref(p, x):
            r = jnp.transpose(x, (0, 2, 3, 1)).reshape(B * HW, cin)
            h = jnp.maximum(jnp.dot(r, p["w1"], precision=hp) * p["s1"] + p["b1"], 0.0)
            return jnp.maximum(jnp.dot(h, p["w2"], precision=hp) * p["s2"] + p["b2"], 0.0)

        def aocl_ref(x2d):
            C = x2d.shape[1]
            K, pd = self.aocl.kernel_size, self.aocl.pad
            h = x2d
            for _ in range(self.aocl.num_convs):
                hpd = jnp.pad(h, ((0, 0), (pd, pd)))
                h = sum(self.aocl.weight[k] * hpd[:, k:k + C] for k in range(K))
            return x2d + jax.nn.sigmoid(h)

        # channel branch
        d2 = dpw_ref(self.conv_2, D).reshape(B, HW, ci)
        attn = jax.nn.softmax(dpw_ref(self.conv_1, E).reshape(B, HW), axis=-1)
        context = jnp.einsum("bpc,bp->bc", d2, attn, precision=hp)
        context = aocl_ref(context)
        gate = jax.nn.sigmoid(self._conv_up(context))[:, :, None, None]
        ch = D * gate + E
        # spatial branch
        e3 = dpw_ref(self.conv_3, E).reshape(B, HW, ci)
        a = jax.nn.softmax(aocl_ref(jnp.mean(e3, axis=1)), axis=-1)
        d4 = dpw_ref(self.conv_4, D).reshape(B, HW, ci)
        ctx = jnp.einsum("bc,bpc->bp", a, d4, precision=hp).reshape(B, 1, H, W)
        sp = E * jax.nn.sigmoid(_layer_norm_nogain(ctx)) + E
        # output conv
        x = sp + ch
        y = lax.conv_general_dilated(
            x, self.out_w, window_strides=(1, 1), padding=((1, 1), (1, 1)),
            dimension_numbers=("NCHW", "OIHW", "NCHW"), precision=hp)
        y = ((y + self.out_b[None, :, None, None]) * self.out_s[None, :, None, None]
             + self.out_bb[None, :, None, None])
        return jnp.maximum(y, 0.0)


if __name__ == "__main__":
    in_channel, out_channel = 64, 32     # inter_channel = 32 -> AOCL: K=3, 3 folded convs
    B, H, W = 2, 16, 16

    key = jax.random.PRNGKey(0)
    k_param, k_e, k_d = jax.random.split(key, 3)

    mod = AODFPallas(in_channel, out_channel, key=k_param)

    E = jax.random.normal(k_e, (B, in_channel, H, W), dtype=jnp.float32)
    D = jax.random.normal(k_d, (B, in_channel, H, W), dtype=jnp.float32)

    out = jax.block_until_ready(mod(E, D))
    ref = jax.block_until_ready(mod.reference(E, D))

    assert out.shape == (B, out_channel, H, W), out.shape
    assert bool(jnp.all(jnp.isfinite(out)))
    max_err = float(jnp.max(jnp.abs(out - ref)))
    assert jnp.allclose(out, ref, atol=2e-2, rtol=2e-2), max_err

    print("KERNEL_OK")
</pallas_src>

<mosaic_0001>
module attributes {stable_mosaic.version = 11 : i64} {
  func.func @_e_branch_kernel(%arg0: i32, %arg1: i32, %arg2: memref<1x64x128xf32, #tpu.memory_space<vmem>>, %arg3: memref<64x64xf32, #tpu.memory_space<vmem>>, %arg4: memref<64x1xf32, #tpu.memory_space<vmem>>, %arg5: memref<33x64xf32, #tpu.memory_space<vmem>>, %arg6: memref<33x1xf32, #tpu.memory_space<vmem>>, %arg7: memref<1x1x128xf32, #tpu.memory_space<vmem>>, %arg8: memref<1x32x1xf32, #tpu.memory_space<vmem>>) attributes {dimension_semantics = [#tpu.dimension_semantics<parallel>, #tpu.dimension_semantics<arbitrary>], iteration_bounds = array<i64: 2, 2>, scalar_prefetch = 0 : i64, scratch_operands = 0 : i64, tpu.core_type = #tpu.core_type<tc>, window_params = [{transform_indices = @transform_0, window_bounds = array<i64: 1, 64, 128>}, {pipeline_mode = #tpu.pipeline_mode<synchronous>, transform_indices = @transform_1, window_bounds = array<i64: 64, 64>}, {pipeline_mode = #tpu.pipeline_mode<synchronous>, transform_indices = @transform_2, window_bounds = array<i64: 64, 1>}, {pipeline_mode = #tpu.pipeline_mode<synchronous>, transform_indices = @transform_3, window_bounds = array<i64: 33, 64>}, {pipeline_mode = #tpu.pipeline_mode<synchronous>, transform_indices = @transform_4, window_bounds = array<i64: 33, 1>}, {transform_indices = @transform_5, window_bounds = array<i64: 1, 1, 128>}, {transform_indices = @transform_6, window_bounds = array<i64: 1, 32, 1>}]} {
    %c0 = arith.constant 0 : index
    %c0_0 = arith.constant 0 : index
    %c0_1 = arith.constant 0 : index
    %0 = vector.load %arg2[%c0, %c0_0, %c0_1] : memref<1x64x128xf32, #tpu.memory_space<vmem>>, vector<1x64x128xf32>
    %1 = vector.shape_cast %0 : vector<1x64x128xf32> to vector<64x128xf32>
    %c0_2 = arith.constant 0 : index
    %c0_3 = arith.constant 0 : index
    %2 = vector.load %arg3[%c0_2, %c0_3] : memref<64x64xf32, #tpu.memory_space<vmem>>, vector<64x64xf32>
    %cst = arith.constant dense<0.000000e+00> : vector<64x128xf32>
    %3 = tpu.matmul %2, %1, %cst {dimension_numbers = #tpu.dot_dimension_numbers<[1], [0], [0], [1], [0, 0, 1, 1], [], []>} : vector<64x64xf32>, vector<64x128xf32>, vector<64x128xf32> -> vector<64x128xf32>
    %c0_4 = arith.constant 0 : index
    %c0_5 = arith.constant 0 : index
    %4 = vector.load %arg4[%c0_4, %c0_5] : memref<64x1xf32, #tpu.memory_space<vmem>>, vector<64x1xf32>
    %5 = vector.broadcast %4 : vector<64x1xf32> to vector<64x128xf32>
    %6 = arith.addf %3, %5 : vector<64x128xf32>
    %cst_6 = arith.constant 0.000000e+00 : f32
    %7 = vector.broadcast %cst_6 : f32 to vector<64x128xf32>
    %8 = arith.maximumf %6, %7 : vector<64x128xf32>
    %c0_7 = arith.constant 0 : index
    %c0_8 = arith.constant 0 : index
    %9 = vector.load %arg5[%c0_7, %c0_8] : memref<33x64xf32, #tpu.memory_space<vmem>>, vector<33x64xf32>
    %cst_9 = arith.constant dense<0.000000e+00> : vector<33x128xf32>
    %10 = tpu.matmul %9, %8, %cst_9 {dimension_numbers = #tpu.dot_dimension_numbers<[1], [0], [0], [1], [0, 0, 1, 1], [], []>} : vector<33x64xf32>, vector<64x128xf32>, vector<33x128xf32> -> vector<33x128xf32>
    %c0_10 = arith.constant 0 : index
    %c0_11 = arith.constant 0 : index
    %11 = vector.load %arg6[%c0_10, %c0_11] : memref<33x1xf32, #tpu.memory_space<vmem>>, vector<33x1xf32>
    %12 = vector.broadcast %11 : vector<33x1xf32> to vector<33x128xf32>
    %13 = arith.addf %10, %12 : vector<33x128xf32>
    %cst_12 = arith.constant 0.000000e+00 : f32
    %14 = vector.broadcast %cst_12 : f32 to vector<33x128xf32>
    %15 = arith.maximumf %13, %14 : vector<33x128xf32>
    %16 = vector.extract_strided_slice %15 {offsets = [32, 0], sizes = [1, 128], strides = [1, 1]} : vector<33x128xf32> to vector<1x128xf32>
    %c0_13 = arith.constant 0 : index
    %c0_14 = arith.constant 0 : index
    %c0_15 = arith.constant 0 : index
    %17 = vector.load %arg7[%c0_13, %c0_14, %c0_15] : memref<1x1x128xf32, #tpu.memory_space<vmem>>, vector<1x1x128xf32>
    %18 = vector.shape_cast %17 : vector<1x1x128xf32> to vector<1x128xf32>
    %19 = vector.shape_cast %16 : vector<1x128xf32> to vector<1x1x128xf32>
    tpu.vector_store %arg7[%c0_13, %c0_14, %c0_15], %19 {strides = array<i32>} : memref<1x1x128xf32, #tpu.memory_space<vmem>>, vector<1x1x128xf32>,
    %c0_i32 = arith.constant 0 : i32
    %20 = arith.cmpi eq, %arg1, %c0_i32 : i32
    %21 = arith.extui %20 : i1 to i32
    %c0_i32_16 = arith.constant 0 : i32
    %22 = arith.cmpi ne, %21, %c0_i32_16 : i32
    scf.if %22 {
      %cst_24 = arith.constant 0.000000e+00 : f32
      %32 = vector.broadcast %cst_24 : f32 to vector<1x32x1xf32>
      %c0_25 = arith.constant 0 : index
      %c0_26 = arith.constant 0 : index
      %c0_27 = arith.constant 0 : index
      %33 = vector.load %arg8[%c0_25, %c0_26, %c0_27] : memref<1x32x1xf32, #tpu.memory_space<vmem>>, vector<1x32x1xf32>
      tpu.vector_store %arg8[%c0_25, %c0_26, %c0_27], %32 {strides = array<i32>} : memref<1x32x1xf32, #tpu.memory_space<vmem>>, vector<1x32x1xf32>,
    } else {
    }
    %c0_17 = arith.constant 0 : index
    %c0_18 = arith.constant 0 : index
    %c0_19 = arith.constant 0 : index
    %23 = vector.load %arg8[%c0_17, %c0_18, %c0_19] : memref<1x32x1xf32, #tpu.memory_space<vmem>>, vector<1x32x1xf32>
    %24 = vector.shape_cast %23 : vector<1x32x1xf32> to vector<32x1xf32>
    %25 = vector.extract_strided_slice %15 {offsets = [0, 0], sizes = [32, 128], strides = [1, 1]} : vector<33x128xf32> to vector<32x128xf32>
    %cst_20 = arith.constant dense<0.000000e+00> : vector<32xf32>
    %26 = vector.multi_reduction <add>, %25, %cst_20 [1] : vector<32x128xf32> to vector<32xf32>
    %27 = vector.shape_cast %26 : vector<32xf32> to vector<32x1xf32>
    %28 = arith.addf %24, %27 : vector<32x1xf32>
    %c0_21 = arith.constant 0 : index
    %c0_22 = arith.constant 0 : index
    %c0_23 = arith.constant 0 : index
    %29 = vector.load %arg8[%c0_21, %c0_22, %c0_23] : memref<1x32x1xf32, #tpu.memory_space<vmem>>, vector<1x32x1xf32>
    %30 = vector.shape_cast %29 : vector<1x32x1xf32> to vector<32x1xf32>
    %31 = vector.shape_cast %28 : vector<32x1xf32> to vector<1x32x1xf32>
    tpu.vector_store %arg8[%c0_21, %c0_22, %c0_23], %31 {strides = array<i32>} : memref<1x32x1xf32, #tpu.memory_space<vmem>>, vector<1x32x1xf32>,
    return
  }
  func.func @transform_0(%arg0: i32, %arg1: i32) -> (i32, i32, i32) {
    %c0_i32 = arith.constant 0 : i32
    %c0_i32_0 = arith.constant 0 : i32
    return %arg0, %c0_i32, %arg1 : i32, i32, i32
  }
  func.func @transform_1(%arg0: i32, %arg1: i32) -> (i32, i32) {
    %c0_i32 = arith.constant 0 : i32
    %c0_i32_0 = arith.constant 0 : i32
    %c0_i32_1 = arith.constant 0 : i32
    return %c0_i32, %c0_i32_0 : i32, i32
  }
  func.func @transform_2(%arg0: i32, %arg1: i32) -> (i32, i32) {
    %c0_i32 = arith.constant 0 : i32
    %c0_i32_0 = arith.constant 0 : i32
    %c0_i32_1 = arith.constant 0 : i32
    return %c0_i32, %c0_i32_0 : i32, i32
  }
  func.func @transform_3(%arg0: i32, %arg1: i32) -> (i32, i32) {
    %c0_i32 = arith.constant 0 : i32
    %c0_i32_0 = arith.constant 0 : i32
    %c0_i32_1 = arith.constant 0 : i32
    return %c0_i32, %c0_i32_0 : i32, i32
  }
  func.func @transform_4(%arg0: i32, %arg1: i32) -> (i32, i32) {
    %c0_i32 = arith.constant 0 : i32
    %c0_i32_0 = arith.constant 0 : i32
    %c0_i32_1 = arith.constant 0 : i32
    return %c0_i32, %c0_i32_0 : i32, i32
  }
  func.func @transform_5(%arg0: i32, %arg1: i32) -> (i32, i32, i32) {
    %c0_i32 = arith.constant 0 : i32
    %c0_i32_0 = arith.constant 0 : i32
    return %arg0, %c0_i32, %arg1 : i32, i32, i32
  }
  func.func @transform_6(%arg0: i32, %arg1: i32) -> (i32, i32, i32) {
    %c0_i32 = arith.constant 0 : i32
    %c0_i32_0 = arith.constant 0 : i32
    %c0_i32_1 = arith.constant 0 : i32
    return %arg0, %c0_i32, %c0_i32_0 : i32, i32, i32
  }
}

</mosaic_0001>

<llo_original>
// kernel: tpu_custom_call.1
$region0: #{tpu_custom_call.1}
  #allocation0 [shape = 'u32[]', space=smem, size = 0x4, offset = 0x4, fixed_abs, tag = 'smem constant byte address 0x4 - core index']
  #allocation1 [shape = 'u32[144,128]{1,0:T(1,128)}', space=vmem, size = 0x12000, scoped, tag = 'internal scratch']
  %s0 = inlined_call_operand.hbm [shape: f32[2,64,256], index: 0, kind: input, shape index: {}]
  %s1 = inlined_call_operand.vmem [shape: f32[64,64], index: 1, kind: input, shape index: {}]
  %s2 = inlined_call_operand.vmem [shape: f32[64,1], index: 2, kind: input, shape index: {}]
  %s3 = inlined_call_operand.vmem [shape: f32[33,64], index: 3, kind: input, shape index: {}]
  %s4 = inlined_call_operand.vmem [shape: f32[33,1], index: 4, kind: input, shape index: {}]
  %s5 = inlined_call_operand.hbm [shape: f32[2,1,256], index: 5, kind: output, shape index: {0}]
  %s6 = inlined_call_operand.vmem [shape: f32[2,32,1], index: 6, kind: output, shape index: {1}]
  %7 = xla_tuple %s5, %s6
  %s8 = sld [smem:[#allocation0]]
  $region69: #{tpu_custom_call.1} parent=0
    _
  %s10 = ssub.s32 1, %s8
  %s11 = scalar_select 0, %s10, %s8
  $region1: #{tpu_custom_call.1} parent=0
    #allocation2 [shape = 'u8[65536]{0}', space=vmem, size = 0x10000, scoped, tag = 'input window, operand 0']
    #allocation3 [shape = 's32[2]{0}', space=sflag, size = 0x8, scoped, tag = 'scoped memory for tpu_custom_call.1']
    #allocation4 [shape = 's32[2]{0}', space=sflag, size = 0x8, scoped, tag = 'scoped memory for tpu_custom_call.1']
    #allocation5 [shape = 'u8[1024]{0}', space=vmem, size = 0x400, scoped, tag = 'output window, operand 0']
    %12 = vsyncpa [#allocation3], 0
    %s13 = scalar_lea.sflag [#allocation3], 1
    %14 = vsyncpa %s13, 0
    %15 = vsyncpa [#allocation4], 0
    %s16 = scalar_lea.sflag [#allocation4], 1
    %17 = vsyncpa %s16, 0
    loop: start=0, step=1, limit=6
    $region2: #{tpu_custom_call.1} parent=1 // loop_pre_header
      _
    $region3: #{tpu_custom_call.1} parent=1 // loop_header
      %s19 = sphi 0, %s23
      %p20 = scmp.ge.s32.totalorder %s19, 6
      %s26 = sphi 0, %s38
      %s27 = sphi 0, %s34
      %s28 = sphi 0, %s26
      %s29 = sphi 0, %s27
      %s30 = sphi 0, %s28
      %s31 = sphi 0, %s29
      %s43 = sphi 0, %s45
      %s46 = sphi 0, %s43
      %s47 = sphi 0, %s46
      %s63 = sphi 0, %s47
      %s67 = sphi 0, %s67
      %s69 = sphi 0, %s67
      %s70 = sphi 0, %s69
      %s84 = sphi 0, %s70
      %s88 = sphi 0, %s88
      %s90 = sphi 0, %s88
      %s91 = sphi 0, %s90
      %s105 = sphi 0, %s91
      %s109 = sphi 0, %s109
      %s111 = sphi 0, %s109
      %s112 = sphi 0, %s111
      %s126 = sphi 0, %s112
      %s130 = sphi 0, %s130
      %s132 = sphi 0, %s130
      %s133 = sphi 0, %s132
      %s147 = sphi 0, %s133
      %s155 = sphi 0, %s157
      %s158 = sphi 0, %s155
      %s159 = sphi 0, %s158
      %s175 = sphi 0, %s159
      %s181 = sphi 0, %s183
      %s184 = sphi 0, %s181
      %s185 = sphi 0, %s184
      %s201 = sphi 0, %s185
    $region4: #{tpu_custom_call.1} parent=1 // loop_header_branch
      %22 = sbr.rel (%p20) target = $region8
    $region5: #{tpu_custom_call.1} parent=1 // loop_body
      %s24 = ssub.s32 %s19, 1
      %s25 = ssub.s32 %s19, 2
      %s32 = sadd.s32 1, %s27
      %p33 = scmp.ge.s32.totalorder %s32, 2
      %s34 = scalar_select %p33, 0, %s32
      %s35 = sadd.s32 1, %s26
      %s36 = scalar_select %p33, %s35, %s26
      %p37 = scmp.ge.s32.totalorder %s36, 2
      %s38 = scalar_select %p37, 0, %s36
      %s39 = ssub.s32 %s26, %s38
      %s40 = ssub.s32 %s27, %s34
      %s41 = sor.u32 %s39, %s40
      %p42 = scmp.eq.s32.totalorder %s41, 0
      %s44 = sadd.s32 %s43, 1
      %s45 = scalar_select %p42, %s43, %s44
      %p48 = pneg %p42
      %p49 = scmp.eq.s32.totalorder %s19, 3
      %p50 = por %p48, %p49
      %p51 = scmp.ne.s32.totalorder %s43, %s46
      %p52 = scmp.eq.s32.totalorder %s19, 0
      %p53 = por %p51, %p52
      %p54 = scmp.ne.s32.totalorder %s43, %s46
      %p55 = scmp.eq.s32.totalorder %s24, 3
      %p56 = por %p54, %p55
      %p57 = scmp.ne.s32.totalorder %s46, %s47
      %p58 = scmp.eq.s32.totalorder %s24, 0
      %p59 = por %p57, %p58
      %p60 = scmp.ne.s32.totalorder %s46, %s47
      %p61 = scmp.eq.s32.totalorder %s25, 3
      %p62 = por %p60, %p61
      %p64 = scmp.ne.s32.totalorder %s47, %s63
      %p65 = scmp.eq.s32.totalorder %s25, 0
      %p66 = por %p64, %p65
      %s68 = sadd.s32 %s67, 1
      %p71 = scmp.eq.s32.totalorder %s19, 3
      %p72 = scmp.ne.s32.totalorder %s67, %s69
      %p73 = scmp.eq.s32.totalorder %s19, 0
      %p74 = por %p72, %p73
      %p75 = scmp.ne.s32.totalorder %s67, %s69
      %p76 = scmp.eq.s32.totalorder %s24, 3
      %p77 = por %p75, %p76
      %p78 = scmp.ne.s32.totalorder %s69, %s70
      %p79 = scmp.eq.s32.totalorder %s24, 0
      %p80 = por %p78, %p79
      %p81 = scmp.ne.s32.totalorder %s69, %s70
      %p82 = scmp.eq.s32.totalorder %s25, 3
      %p83 = por %p81, %p82
      %p85 = scmp.ne.s32.totalorder %s70, %s84
      %p86 = scmp.eq.s32.totalorder %s25, 0
      %p87 = por %p85, %p86
      %s89 = sadd.s32 %s88, 1
      %p92 = scmp.eq.s32.totalorder %s19, 3
      %p93 = scmp.ne.s32.totalorder %s88, %s90
      %p94 = scmp.eq.s32.totalorder %s19, 0
      %p95 = por %p93, %p94
      %p96 = scmp.ne.s32.totalorder %s88, %s90
      %p97 = scmp.eq.s32.totalorder %s24, 3
      %p98 = por %p96, %p97
      %p99 = scmp.ne.s32.totalorder %s90, %s91
      %p100 = scmp.eq.s32.totalorder %s24, 0
      %p101 = por %p99, %p100
      %p102 = scmp.ne.s32.totalorder %s90, %s91
      %p103 = scmp.eq.s32.totalorder %s25, 3
      %p104 = por %p102, %p103
      %p106 = scmp.ne.s32.totalorder %s91, %s105
      %p107 = scmp.eq.s32.totalorder %s25, 0
      %p108 = por %p106, %p107
      %s110 = sadd.s32 %s109, 1
      %p113 = scmp.eq.s32.totalorder %s19, 3
      %p114 = scmp.ne.s32.totalorder %s109, %s111
      %p115 = scmp.eq.s32.totalorder %s19, 0
      %p116 = por %p114, %p115
      %p117 = scmp.ne.s32.totalorder %s109, %s111
      %p118 = scmp.eq.s32.totalorder %s24, 3
      %p119 = por %p117, %p118
      %p120 = scmp.ne.s32.totalorder %s111, %s112
      %p121 = scmp.eq.s32.totalorder %s24, 0
      %p122 = por %p120, %p121
      %p123 = scmp.ne.s32.totalorder %s111, %s112
      %p124 = scmp.eq.s32.totalorder %s25, 3
      %p125 = por %p123, %p124
      %p127 = scmp.ne.s32.totalorder %s112, %s126
      %p128 = scmp.eq.s32.totalorder %s25, 0
      %p129 = por %p127, %p128
      %s131 = sadd.s32 %s130, 1
      %p134 = scmp.eq.s32.totalorder %s19, 3
      %p135 = scmp.ne.s32.totalorder %s130, %s132
      %p136 = scmp.eq.s32.totalorder %s19, 0
      %p137 = por %p135, %p136
      %p138 = scmp.ne.s32.totalorder %s130, %s132
      %p139 = scmp.eq.s32.totalorder %s24, 3
      %p140 = por %p138, %p139
      %p141 = scmp.ne.s32.totalorder %s132, %s133
      %p142 = scmp.eq.s32.totalorder %s24, 0
      %p143 = por %p141, %p142
      %p144 = scmp.ne.s32.totalorder %s132, %s133
      %p145 = scmp.eq.s32.totalorder %s25, 3
      %p146 = por %p144, %p145
      %p148 = scmp.ne.s32.totalorder %s133, %s147
      %p149 = scmp.eq.s32.totalorder %s25, 0
      %p150 = por %p148, %p149
      %s151 = ssub.s32 %s26, %s38
      %s152 = ssub.s32 %s27, %s34
      %s153 = sor.u32 %s151, %s152
      %p154 = scmp.eq.s32.totalorder %s153, 0
      %s156 = sadd.s32 %s155, 1
      %s157 = scalar_select %p154, %s155, %s156
      %p160 = pneg %p154
      %p161 = scmp.eq.s32.totalorder %s19, 3
      %p162 = por %p160, %p161
      %p163 = scmp.ne.s32.totalorder %s155, %s158
      %p164 = scmp.eq.s32.totalorder %s19, 0
      %p165 = por %p163, %p164
      %p166 = scmp.ne.s32.totalorder %s155, %s158
      %p167 = scmp.eq.s32.totalorder %s24, 3
      %p168 = por %p166, %p167
      %p169 = scmp.ne.s32.totalorder %s158, %s159
      %p170 = scmp.eq.s32.totalorder %s24, 0
      %p171 = por %p169, %p170
      %p172 = scmp.ne.s32.totalorder %s158, %s159
      %p173 = scmp.eq.s32.totalorder %s25, 3
      %p174 = por %p172, %p173
      %p176 = scmp.ne.s32.totalorder %s159, %s175
      %p177 = scmp.eq.s32.totalorder %s25, 0
      %p178 = por %p176, %p177
      %s179 = ssub.s32 %s26, %s38
      %p180 = scmp.eq.s32.totalorder %s179, 0
      %s182 = sadd.s32 %s181, 1
      %s183 = scalar_select %p180, %s181, %s182
      %p186 = pneg %p180
      %p187 = scmp.eq.s32.totalorder %s19, 3
      %p188 = por %p186, %p187
      %p189 = scmp.ne.s32.totalorder %s181, %s184
      %p190 = scmp.eq.s32.totalorder %s19, 0
      %p191 = por %p189, %p190
      %p192 = scmp.ne.s32.totalorder %s181, %s184
      %p193 = scmp.eq.s32.totalorder %s24, 3
      %p194 = por %p192, %p193
      %p195 = scmp.ne.s32.totalorder %s184, %s185
      %p196 = scmp.eq.s32.totalorder %s24, 0
      %p197 = por %p195, %p196
      %p198 = scmp.ne.s32.totalorder %s184, %s185
      %p199 = scmp.eq.s32.totalorder %s25, 3
      %p200 = por %p198, %p199
      %p202 = scmp.ne.s32.totalorder %s185, %s201
      %p203 = scmp.eq.s32.totalorder %s25, 0
      %p204 = por %p202, %p203
      %p205 = scmp.le.s32.totalorder 1, %s19
      %p206 = scmp.lt.s32.totalorder %s19, 5
      %p207 = pnand %p205, %p206
      %p208 = pneg %p207
      // Predicated region
      $region9: #{tpu_custom_call.1} parent=5 // pred_check
        _
      $region10: #{tpu_custom_call.1} parent=5 // pred_check_branch
        %210 = sbr.rel (%p207) target = $region12
      $region11: #{tpu_custom_call.1} parent=5 // pred_region
        %s211 = ssub.s32 %s19, 1
        // Predicated region
        $region13: #{tpu_custom_call.1} parent=11 // pred_check
          %p212 = pneg %p80
        $region14: #{tpu_custom_call.1} parent=11 // pred_check_branch
          %214 = sbr.rel (%p212) target = $region16
        $region15: #{tpu_custom_call.1} parent=11 // pred_region
          _
        $region16: #{tpu_custom_call.1} parent=11 // pred_fallthru
          _
        // Predicated region
        $region17: #{tpu_custom_call.1} parent=11 // pred_check
          %p215 = pneg %p101
        $region18: #{tpu_custom_call.1} parent=11 // pred_check_branch
          %217 = sbr.rel (%p215) target = $region20
        $region19: #{tpu_custom_call.1} parent=11 // pred_region
          _
        $region20: #{tpu_custom_call.1} parent=11 // pred_fallthru
          _
        // Predicated region
        $region21: #{tpu_custom_call.1} parent=11 // pred_check
          %p218 = pneg %p122
        $region22: #{tpu_custom_call.1} parent=11 // pred_check_branch
          %220 = sbr.rel (%p218) target = $region24
        $region23: #{tpu_custom_call.1} parent=11 // pred_region
          _
        $region24: #{tpu_custom_call.1} parent=11 // pred_fallthru
          _
        // Predicated region
        $region25: #{tpu_custom_call.1} parent=11 // pred_check
          %p221 = pneg %p143
        $region26: #{tpu_custom_call.1} parent=11 // pred_check_branch
          %223 = sbr.rel (%p221) target = $region28
        $region27: #{tpu_custom_call.1} parent=11 // pred_region
          _
        $region28: #{tpu_custom_call.1} parent=11 // pred_fallthru
          _
      $region12: #{tpu_custom_call.1} parent=5 // pred_fallthru
        _
      %p224 = scmp.lt.s32.totalorder %s19, 4
      // Predicated region
      $region29: #{tpu_custom_call.1} parent=5 // pred_check
        %p225 = pneg %p224
      $region30: #{tpu_custom_call.1} parent=5 // pred_check_branch
        %227 = sbr.rel (%p225) target = $region32
      $region31: #{tpu_custom_call.1} parent=5 // pred_region
        // Predicated region
        $region33: #{tpu_custom_call.1} parent=31 // pred_check
          %p228 = pneg %p53
        $region34: #{tpu_custom_call.1} parent=31 // pred_check_branch
          %230 = sbr.rel (%p228) target = $region36
        $region35: #{tpu_custom_call.1} parent=31 // pred_region
          %s231 = sand.u32 %s43, 1
          %s232 = scalar_lea.sflag [#allocation3], %s231
          %s233 = sand.u32 %s43, 1
          %s234 = smul.addr %s233, 64
          %s235 = scalar_lea.vmem [#allocation2], %s234
          %s237 = ssub.s32 1024, 1024
          %238 = vsyncadd %s232, %s237
          %s239 = smul.addr %s26, 16
          %s240 = sadd.s32 %s27, %s239
          %s241 = smul.addr %s240, 128
          %s242 = scalar_lea.hbm %s0, %s241
          %s243 = sshll.u32 %s235, 4
          %s244 = int_to_ptr.vmem [resolvable:$true] %s243
          %249 = dma.hbm_to_vmem [thread:$0]  %s242, 1024, %s244, %s232, 256, 128, 8
        $region36: #{tpu_custom_call.1} parent=31 // pred_fallthru
          _
      $region32: #{tpu_custom_call.1} parent=5 // pred_fallthru
        _
      %p250 = scmp.le.s32.totalorder 1, %s19
      %p251 = scmp.lt.s32.totalorder %s19, 5
      %p252 = pnand %p250, %p251
      %p253 = pneg %p252
      // Predicated region
      $region37: #{tpu_custom_call.1} parent=5 // pred_check
        _
      $region38: #{tpu_custom_call.1} parent=5 // pred_check_branch
        %255 = sbr.rel (%p252) target = $region40
      $region39: #{tpu_custom_call.1} parent=5 // pred_region
        %s256 = ssub.s32 %s19, 1
        %s257 = sand.u32 %s46, 1
        %s258 = scalar_lea.sflag [#allocation3], %s257
        %s259 = sand.u32 %s46, 1
        %s260 = smul.addr %s259, 64
        %s261 = scalar_lea.vmem [#allocation2], %s260
        // Predicated region
        $region41: #{tpu_custom_call.1} parent=39 // pred_check
          %p262 = pneg %p59
        $region42: #{tpu_custom_call.1} parent=39 // pred_check_branch
          %264 = sbr.rel (%p262) target = $region44
        $region43: #{tpu_custom_call.1} parent=39 // pred_region
          %265 = dma.done %s258, 1024
        $region44: #{tpu_custom_call.1} parent=39 // pred_fallthru
          _
        %s266 = sand.u32 %s46, 1
        %s267 = scalar_lea.sflag [#allocation3], %s266
        %s268 = sand.u32 %s46, 1
        %s269 = smul.addr %s268, 64
        %s270 = scalar_lea.vmem [#allocation2], %s269
        %p271 = pneg %p59
        %p272 = pneg %p56
        %p273 = pneg %p80
        %p274 = pneg %p77
        %p275 = pneg %p101
        %p276 = pneg %p98
        %p277 = pneg %p122
        %p278 = pneg %p119
        %p279 = pneg %p143
        %p280 = pneg %p140
        %p281 = pneg %p171
        %p282 = pneg %p168
        %s283 = sand.u32 %s158, 1
        %s284 = scalar_lea.sflag [#allocation4], %s283
        %s285 = sand.u32 %s158, 1
        %s286 = scalar_lea.vmem [#allocation5], %s285
        %p287 = pneg %p197
        %p288 = pneg %p194
        %p289 = scmp.lt.s32.totalorder %s28, 1
        %s290 = scalar_select %p289, %s28, 1
        %s291 = smul.addr %s290, 4
        %s292 = smul.addr %s291, 8
        %s293 = scalar_lea.vmem %s6, %s292
        %p294 = scmp.lt.s32.totalorder %s28, 1
        %s295 = scalar_select %p294, %s28, 1
        %s296 = smul.addr %s295, 4
        %s297 = smul.addr %s296, 8
        %s298 = scalar_lea.vmem %s6, %s297
        %v299 = vld [vmem:[%s261] sm:$0xff]
        %v300 = vld [vmem:[%s261 + $0x8] sm:$0xff]
        %v301 = vld [vmem:[%s261 + $0x10] sm:$0xff]
        %v302 = vld [vmem:[%s261 + $0x18] sm:$0xff]
        %v303 = vld [vmem:[%s261 + $0x20] sm:$0xff]
        %v304 = vld [vmem:[%s261 + $0x28] sm:$0xff]
        %v305 = vld [vmem:[%s261 + $0x30] sm:$0xff]
        %v306 = vld [vmem:[%s261 + $0x38] sm:$0xff]
        %v307 = vld [vmem:[%s1] sm:$0xff]
        %v308 = vld [vmem:[%s1 + $0x8] sm:$0xff]
        %v309 = vld [vmem:[%s1 + $0x10] sm:$0xff]
        %v310 = vld [vmem:[%s1 + $0x18] sm:$0xff]
        %v311 = vld [vmem:[%s1 + $0x20] sm:$0xff]
        %v312 = vld [vmem:[%s1 + $0x28] sm:$0xff]
        %v313 = vld [vmem:[%s1 + $0x30] sm:$0xff]
        %v314 = vld [vmem:[%s1 + $0x38] sm:$0xff]
        %v315 = vld [vmem:[%s2] sm:$0xff]
        %v316 = vld [vmem:[%s2 + $0x8] sm:$0xff]
        %v317 = vld [vmem:[%s2 + $0x10] sm:$0xff]
        %v318 = vld [vmem:[%s2 + $0x18] sm:$0xff]
        %v319 = vld [vmem:[%s2 + $0x20] sm:$0xff]
        %v320 = vld [vmem:[%s2 + $0x28] sm:$0xff]
        %v321 = vld [vmem:[%s2 + $0x30] sm:$0xff]
        %v322 = vld [vmem:[%s2 + $0x38] sm:$0xff]
        %324 = vset.pattern.permute.xlu0 0
        %325 = vperm.xlu0 %324, %v315
        %v326 = vpop.permute.xlu0 %325
        %329 = vset.pattern.permute.xlu0 0
        %330 = vperm.xlu0 %329, %v316
        %v331 = vpop.permute.xlu0 %330
        %334 = vset.pattern.permute.xlu0 0
        %335 = vperm.xlu0 %334, %v317
        %v336 = vpop.permute.xlu0 %335
        %339 = vset.pattern.permute.xlu0 0
        %340 = vperm.xlu0 %339, %v318
        %v341 = vpop.permute.xlu0 %340
        %344 = vset.pattern.permute.xlu0 0
        %345 = vperm.xlu0 %344, %v319
        %v346 = vpop.permute.xlu0 %345
        %349 = vset.pattern.permute.xlu0 0
        %350 = vperm.xlu0 %349, %v320
        %v351 = vpop.permute.xlu0 %350
        %354 = vset.pattern.permute.xlu0 0
        %355 = vperm.xlu0 %354, %v321
        %v356 = vpop.permute.xlu0 %355
        %359 = vset.pattern.permute.xlu0 0
        %360 = vperm.xlu0 %359, %v322
        %v361 = vpop.permute.xlu0 %360
        %vm363 = vcmask 523264
        %v365 = vsel %vm363, %v307, 0
        %v368 = vsel %vm363, %v308, 0
        %v371 = vsel %vm363, %v309, 0
        %v374 = vsel %vm363, %v310, 0
        %v377 = vsel %vm363, %v311, 0
        %v380 = vsel %vm363, %v312, 0
        %v383 = vsel %vm363, %v313, 0
        %v386 = vsel %vm363, %v314, 0
        %388 = vmatprep.subr.mxu0 0.0
        %389 = vmatpush1.msra.mxu0 %v299
        %390 = vmatprep.subr.mxu0 0.0
        %391 = vmatpush1.msra.mxu0 %v300
        %392 = vmatprep.subr.mxu0 0.0
        %393 = vmatpush1.msra.mxu0 %v301
        %394 = vmatprep.subr.mxu0 0.0
        %395 = vmatpush1.msra.mxu0 %v302
        %396 = vmatprep.subr.mxu0 0.0
        %397 = vmatpush1.msra.mxu0 %v303
        %398 = vmatprep.subr.mxu0 0.0
        %399 = vmatpush1.msra.mxu0 %v304
        %400 = vmatprep.subr.mxu0 0.0
        %401 = vmatpush1.msra.mxu0 %v305
        %402 = vmatprep.subr.mxu0 0.0
        %403 = vmatpush1.msra.mxu0 %v306
        %404 = vmatprep.subr.mxu0 0.0
        %405 = vmatpush1.msra.mxu0 0.0
        %406 = vmatprep.subr.mxu0 0.0
        %407 = vmatpush1.msra.mxu0 0.0
        %408 = vmatprep.subr.mxu0 0.0
        %409 = vmatpush1.msra.mxu0 0.0
        %410 = vmatprep.subr.mxu0 0.0
        %411 = vmatpush1.msra.mxu0 0.0
        %412 = vmatprep.subr.mxu0 0.0
        %413 = vmatpush1.msra.mxu0 0.0
        %414 = vmatprep.subr.mxu0 0.0
        %415 = vmatpush1.msra.mxu0 0.0
        %416 = vmatprep.subr.mxu0 0.0
        %417 = vmatpush1.msra.mxu0 0.0
        %418 = vmatprep.subr.mxu0 0.0
        %419 = vmatpush1.msra.mxu0 0.0
        %420 = vmatprep.subr.mxu0 0.0
        %421 = vmatpush1.msra.mxu0 0.0
        %422 = vmatprep.subr.mxu0 0.0
        %423 = vmatpush1.msra.mxu0 0.0
        %424 = vmatprep.subr.mxu0 0.0
        %425 = vmatpush1.msra.mxu0 0.0
        %426 = vmatprep.subr.mxu0 0.0
        %427 = vmatpush1.msra.mxu0 0.0
        %428 = vmatprep.subr.mxu0 0.0
        %429 = vmatpush1.msra.mxu0 0.0
        %430 = vmatprep.subr.mxu0 0.0
        %431 = vmatpush1.msra.mxu0 0.0
        %432 = vmatprep.subr.mxu0 0.0
        %433 = vmatpush1.msra.mxu0 0.0
        %434 = vmatprep.subr.mxu0 0.0
        %435 = vmatpush1.msra.mxu0 0.0
        %436 = vmatprep.subr.mxu0 0.0
        %437 = vmatpush1.msra.mxu0 0.0
        %438 = vmatprep.subr.mxu0 0.0
        %439 = vmatpush1.msra.mxu0 0.0
        %440 = vmatprep.subr.mxu0 0.0
        %441 = vmatpush1.msra.mxu0 0.0
        %442 = vmatprep.subr.mxu0 0.0
        %443 = vmatpush1.msra.mxu0 0.0
        %444 = vmatprep.subr.mxu0 0.0
        %445 = vmatpush1.msra.mxu0 0.0
        %446 = vmatprep.subr.mxu0 0.0
        %447 = vmatpush1.msra.mxu0 0.0
        %448 = vmatprep.subr.mxu0 0.0
        %449 = vmatpush1.msra.mxu0 0.0
        %450 = vmatprep.subr.mxu0 0.0
        %451 = vmatpush1.msra.mxu0 0.0
        %452 = vmatprep.mubr.f32.mxu0 0.0
        %453 = vmatmul.mubr.f32.gmra.mrb[0].mxu0 %v365
        %v454 = vpop.f32.mrb[0].mxu0
        %v455 = vadd.f32 %v326, %v454
        %v456 = vpop.f32.mrb[0].mxu0
        %457 = vmatprep.mubr.f32.mxu0 0.0
        %458 = vmatmul.mubr.f32.gmra.mrb[0].mxu0 %v368
        %v459 = vpop.f32.mrb[0].mxu0
        %v460 = vadd.f32 %v331, %v459
        %v461 = vpop.f32.mrb[0].mxu0
        %462 = vmatprep.mubr.f32.mxu0 0.0
        %463 = vmatmul.mubr.f32.gmra.mrb[0].mxu0 %v371
        %v464 = vpop.f32.mrb[0].mxu0
        %v465 = vadd.f32 %v336, %v464
        %v466 = vpop.f32.mrb[0].mxu0
        %467 = vmatprep.mubr.f32.mxu0 0.0
        %468 = vmatmul.mubr.f32.gmra.mrb[0].mxu0 %v374
        %v469 = vpop.f32.mrb[0].mxu0
        %v470 = vadd.f32 %v341, %v469
        %v471 = vpop.f32.mrb[0].mxu0
        %472 = vmatprep.mubr.f32.mxu0 0.0
        %473 = vmatmul.mubr.f32.gmra.mrb[0].mxu0 %v377
        %v474 = vpop.f32.mrb[0].mxu0
        %v475 = vadd.f32 %v346, %v474
        %v476 = vpop.f32.mrb[0].mxu0
        %477 = vmatprep.mubr.f32.mxu0 0.0
        %478 = vmatmul.mubr.f32.gmra.mrb[0].mxu0 %v380
        %v479 = vpop.f32.mrb[0].mxu0
        %v480 = vadd.f32 %v351, %v479
        %v481 = vpop.f32.mrb[0].mxu0
        %482 = vmatprep.mubr.f32.mxu0 0.0
        %483 = vmatmul.mubr.f32.gmra.mrb[0].mxu0 %v383
        %v484 = vpop.f32.mrb[0].mxu0
        %v485 = vadd.f32 %v356, %v484
        %v486 = vpop.f32.mrb[0].mxu0
        %487 = vmatprep.mubr.f32.mxu0 0.0
        %488 = vmatmul.mubr.f32.gmra.mrb[0].mxu0 %v386
        %v489 = vpop.f32.mrb[0].mxu0
        %v490 = vadd.f32 %v361, %v489
        %v491 = vpop.f32.mrb[0].mxu0
        %492 = vdwg.mxu0
        %v493 = vmax.f32 %v455, 0.0
        %v494 = vmax.f32 %v460, 0.0
        %v495 = vmax.f32 %v465, 0.0
        %v496 = vmax.f32 %v470, 0.0
        %v497 = vmax.f32 %v475, 0.0
        %v498 = vmax.f32 %v480, 0.0
        %v499 = vmax.f32 %v485, 0.0
        %v500 = vmax.f32 %v490, 0.0
        %v501 = vld [vmem:[%s3] sm:$0xff]
        %v502 = vld [vmem:[%s3 + $0x8] sm:$0xff]
        %v503 = vld [vmem:[%s3 + $0x10] sm:$0xff]
        %v504 = vld [vmem:[%s3 + $0x18] sm:$0xff]
        %v505 = vld [vmem:[%s3 + $0x20] sm:$0x1]
        %v506 = vld [vmem:[%s4] sm:$0xff]
        %v507 = vld [vmem:[%s4 + $0x8] sm:$0xff]
        %v508 = vld [vmem:[%s4 + $0x10] sm:$0xff]
        %v509 = vld [vmem:[%s4 + $0x18] sm:$0xff]
        %v510 = vld [vmem:[%s4 + $0x20] sm:$0x1]
        %512 = vset.pattern.permute.xlu0 0
        %513 = vperm.xlu0 %512, %v506
        %v514 = vpop.permute.xlu0 %513
        %517 = vset.pattern.permute.xlu0 0
        %518 = vperm.xlu0 %517, %v507
        %v519 = vpop.permute.xlu0 %518
        %522 = vset.pattern.permute.xlu0 0
        %523 = vperm.xlu0 %522, %v508
        %v524 = vpop.permute.xlu0 %523
        %527 = vset.pattern.permute.xlu0 0
        %528 = vperm.xlu0 %527, %v509
        %v529 = vpop.permute.xlu0 %528
        %532 = vset.pattern.permute.xlu0 0
        %533 = vperm.xlu0 %532, %v510
        %v534 = vpop.permute.xlu0 %533
        %v537 = vsel %vm363, %v501, 0
        %v540 = vsel %vm363, %v502, 0
        %v543 = vsel %vm363, %v503, 0
        %v546 = vsel %vm363, %v504, 0
        %v549 = vsel %vm363, %v505, 0
        %551 = vmatprep.subr.mxu0 0.0
        %552 = vmatpush1.msra.mxu0 %v493
        %553 = vmatprep.subr.mxu0 0.0
        %554 = vmatpush1.msra.mxu0 %v494
        %555 = vmatprep.subr.mxu0 0.0
        %556 = vmatpush1.msra.mxu0 %v495
        %557 = vmatprep.subr.mxu0 0.0
        %558 = vmatpush1.msra.mxu0 %v496
        %559 = vmatprep.subr.mxu0 0.0
        %560 = vmatpush1.msra.mxu0 %v497
        %561 = vmatprep.subr.mxu0 0.0
        %562 = vmatpush1.msra.mxu0 %v498
        %563 = vmatprep.subr.mxu0 0.0
        %564 = vmatpush1.msra.mxu0 %v499
        %565 = vmatprep.subr.mxu0 0.0
        %566 = vmatpush1.msra.mxu0 %v500
        %567 = vmatprep.subr.mxu0 0.0
        %568 = vmatpush1.msra.mxu0 0.0
        %569 = vmatprep.subr.mxu0 0.0
        %570 = vmatpush1.msra.mxu0 0.0
        %571 = vmatprep.subr.mxu0 0.0
        %572 = vmatpush1.msra.mxu0 0.0
        %573 = vmatprep.subr.mxu0 0.0
        %574 = vmatpush1.msra.mxu0 0.0
        %575 = vmatprep.subr.mxu0 0.0
        %576 = vmatpush1.msra.mxu0 0.0
        %577 = vmatprep.subr.mxu0 0.0
        %578 = vmatpush1.msra.mxu0 0.0
        %579 = vmatprep.subr.mxu0 0.0
        %580 = vmatpush1.msra.mxu0 0.0
        %581 = vmatprep.subr.mxu0 0.0
        %582 = vmatpush1.msra.mxu0 0.0
        %583 = vmatprep.subr.mxu0 0.0
        %584 = vmatpush1.msra.mxu0 0.0
        %585 = vmatprep.subr.mxu0 0.0
        %586 = vmatpush1.msra.mxu0 0.0
        %587 = vmatprep.subr.mxu0 0.0
        %588 = vmatpush1.msra.mxu0 0.0
        %589 = vmatprep.subr.mxu0 0.0
        %590 = vmatpush1.msra.mxu0 0.0
        %591 = vmatprep.subr.mxu0 0.0
        %592 = vmatpush1.msra.mxu0 0.0
        %593 = vmatprep.subr.mxu0 0.0
        %594 = vmatpush1.msra.mxu0 0.0
        %595 = vmatprep.subr.mxu0 0.0
        %596 = vmatpush1.msra.mxu0 0.0
        %597 = vmatprep.subr.mxu0 0.0
        %598 = vmatpush1.msra.mxu0 0.0
        %599 = vmatprep.subr.mxu0 0.0
        %600 = vmatpush1.msra.mxu0 0.0
        %601 = vmatprep.subr.mxu0 0.0
        %602 = vmatpush1.msra.mxu0 0.0
        %603 = vmatprep.subr.mxu0 0.0
        %604 = vmatpush1.msra.mxu0 0.0
        %605 = vmatprep.subr.mxu0 0.0
        %606 = vmatpush1.msra.mxu0 0.0
        %607 = vmatprep.subr.mxu0 0.0
        %608 = vmatpush1.msra.mxu0 0.0
        %609 = vmatprep.subr.mxu0 0.0
        %610 = vmatpush1.msra.mxu0 0.0
        %611 = vmatprep.subr.mxu0 0.0
        %612 = vmatpush1.msra.mxu0 0.0
        %613 = vmatprep.subr.mxu0 0.0
        %614 = vmatpush1.msra.mxu0 0.0
        %615 = vmatprep.mubr.f32.mxu0 0.0
        %616 = vmatmul.mubr.f32.gmra.mrb[0].mxu0 %v537
        %v617 = vpop.f32.mrb[0].mxu0
        %v618 = vadd.f32 %v514, %v617
        %v619 = vpop.f32.mrb[0].mxu0
        %620 = vmatprep.mubr.f32.mxu0 0.0
        %621 = vmatmul.mubr.f32.gmra.mrb[0].mxu0 %v540
        %v622 = vpop.f32.mrb[0].mxu0
        %v623 = vadd.f32 %v519, %v622
        %v624 = vpop.f32.mrb[0].mxu0
        %625 = vmatprep.mubr.f32.mxu0 0.0
        %626 = vmatmul.mubr.f32.gmra.mrb[0].mxu0 %v543
        %v627 = vpop.f32.mrb[0].mxu0
        %v628 = vadd.f32 %v524, %v627
        %v629 = vpop.f32.mrb[0].mxu0
        %630 = vmatprep.mubr.f32.mxu0 0.0
        %631 = vmatmul.mubr.f32.gmra.mrb[0].mxu0 %v546
        %v632 = vpop.f32.mrb[0].mxu0
        %v633 = vadd.f32 %v529, %v632
        %v634 = vpop.f32.mrb[0].mxu0
        %635 = vmatprep.mubr.f32.mxu0 0.0
        %636 = vmatmul.mubr.f32.gmra.mrb[0].mxu0 %v549
        %v637 = vpop.f32.mrb[0].mxu0
        %v638 = vadd.f32 %v534, %v637
        %v639 = vpop.f32.mrb[0].mxu0
        %640 = vdwg.mxu0
        %v641 = vmax.f32 %v618, 0.0
        %v642 = vmax.f32 %v623, 0.0
        %v643 = vmax.f32 %v628, 0.0
        %v644 = vmax.f32 %v633, 0.0
        %v645 = vmax.f32 %v638, 0.0
        %646 = vst [vmem:[%s286] sm:$0x1] %v645
        %p647 = scmp.eq.s32.totalorder %s29, 0
        // Predicated region
        $region45: #{tpu_custom_call.1} parent=39 // pred_check
          %p648 = pneg %p647
        $region46: #{tpu_custom_call.1} parent=39 // pred_check_branch
          %650 = sbr.rel (%p648) target = $region48
        $region47: #{tpu_custom_call.1} parent=39 // pred_region
          %vm651 = vcmask 7168
          %652 = vst.msk [vmem:[%s298] sm:$0xff] %vm651, 0.0
          %653 = vst.msk [vmem:[%s298 + $0x8] sm:$0xff] %vm651, 0.0
          %654 = vst.msk [vmem:[%s298 + $0x10] sm:$0xff] %vm651, 0.0
          %655 = vst.msk [vmem:[%s298 + $0x18] sm:$0xff] %vm651, 0.0
        $region48: #{tpu_custom_call.1} parent=39 // pred_fallthru
          _
        %v656 = vld [vmem:[%s298] sm:$0xff]
        %v657 = vld [vmem:[%s298 + $0x8] sm:$0xff]
        %v658 = vld [vmem:[%s298 + $0x10] sm:$0xff]
        %v659 = vld [vmem:[%s298 + $0x18] sm:$0xff]
        %660 = vadd.xlane.f32.xlu0 %v641
        %v661 = vpop.xlane.xlu0 %660
        %662 = vadd.xlane.f32.xlu0 %v642
        %v663 = vpop.xlane.xlu0 %662
        %664 = vadd.xlane.f32.xlu0 %v643
        %v665 = vpop.xlane.xlu0 %664
        %666 = vadd.xlane.f32.xlu0 %v644
        %v667 = vpop.xlane.xlu0 %666
        %v668 = vadd.f32 %v656, %v661
        %v669 = vadd.f32 %v657, %v663
        %v670 = vadd.f32 %v658, %v665
        %v671 = vadd.f32 %v659, %v667
        %vm672 = vcmask 7168
        %673 = vst.msk [vmem:[%s298] sm:$0xff] %vm672, %v668
        %674 = vst.msk [vmem:[%s298 + $0x8] sm:$0xff] %vm672, %v669
        %675 = vst.msk [vmem:[%s298 + $0x10] sm:$0xff] %vm672, %v670
        %676 = vst.msk [vmem:[%s298 + $0x18] sm:$0xff] %vm672, %v671
        %s677 = sand.u32 %s158, 1
        %s678 = scalar_lea.sflag [#allocation4], %s677
        %s679 = sand.u32 %s158, 1
        %s680 = scalar_lea.vmem [#allocation5], %s679
        %p681 = scmp.lt.s32.totalorder %s28, 1
        %s682 = scalar_select %p681, %s28, 1
        %s683 = smul.addr %s682, 4
        %s684 = smul.addr %s683, 8
        %s685 = scalar_lea.vmem %s6, %s684
        // Predicated region
        $region49: #{tpu_custom_call.1} parent=39 // pred_check
          %p686 = pneg %p168
        $region50: #{tpu_custom_call.1} parent=39 // pred_check_branch
          %688 = sbr.rel (%p686) target = $region52
        $region51: #{tpu_custom_call.1} parent=39 // pred_region
          %s690 = ssub.s32 16, 16
          %691 = vsyncadd %s678, %s690
          %s692 = smul.addr %s28, 2
          %s693 = sadd.s32 %s29, %s692
          %s694 = smul.addr %s693, 16
          %s695 = scalar_lea.hbm %s5, %s694
          %s697 = sshll.u32 %s680, 4
          %s698 = int_to_ptr.vmem [resolvable:$true] %s697
          %700 = dma.vmem_to_hbm [thread:$0]  %s698, 16, %s695, %s678
        $region52: #{tpu_custom_call.1} parent=39 // pred_fallthru
          _
        // Predicated region
        $region53: #{tpu_custom_call.1} parent=39 // pred_check
          %p701 = pneg %p194
        $region54: #{tpu_custom_call.1} parent=39 // pred_check_branch
          %703 = sbr.rel (%p701) target = $region56
        $region55: #{tpu_custom_call.1} parent=39 // pred_region
          _
        $region56: #{tpu_custom_call.1} parent=39 // pred_fallthru
          _
      $region40: #{tpu_custom_call.1} parent=5 // pred_fallthru
        _
      %p704 = scmp.le.s32.totalorder 2, %s19
      // Predicated region
      $region57: #{tpu_custom_call.1} parent=5 // pred_check
        %p705 = pneg %p704
      $region58: #{tpu_custom_call.1} parent=5 // pred_check_branch
        %707 = sbr.rel (%p705) target = $region60
      $region59: #{tpu_custom_call.1} parent=5 // pred_region
        %s708 = ssub.s32 %s19, 2
        // Predicated region
        $region61: #{tpu_custom_call.1} parent=59 // pred_check
          %p709 = pneg %p174
        $region62: #{tpu_custom_call.1} parent=59 // pred_check_branch
          %711 = sbr.rel (%p709) target = $region64
        $region63: #{tpu_custom_call.1} parent=59 // pred_region
          %s712 = sand.u32 %s159, 1
          %s713 = scalar_lea.sflag [#allocation4], %s712
          %s714 = sand.u32 %s159, 1
          %s715 = scalar_lea.vmem [#allocation5], %s714
          %716 = dma.done %s713, 16
        $region64: #{tpu_custom_call.1} parent=59 // pred_fallthru
          _
        // Predicated region
        $region65: #{tpu_custom_call.1} parent=59 // pred_check
          %p717 = pneg %p200
        $region66: #{tpu_custom_call.1} parent=59 // pred_check_branch
          %719 = sbr.rel (%p717) target = $region68
        $region67: #{tpu_custom_call.1} parent=59 // pred_region
          %p720 = scmp.lt.s32.totalorder %s30, 1
          %s721 = scalar_select %p720, %s30, 1
          %s722 = smul.addr %s721, 4
          %s723 = smul.addr %s722, 8
          %s724 = scalar_lea.vmem %s6, %s723
        $region68: #{tpu_custom_call.1} parent=59 // pred_fallthru
          _
      $region60: #{tpu_custom_call.1} parent=5 // pred_fallthru
        _
    $region6: #{tpu_custom_call.1} parent=1 // loop_footer
      %s23 = sadd.s32 1, %s19
    $region7: #{tpu_custom_call.1} parent=1 // loop_footer_branch
      %18 = sbr.rel target = $region3
    $region8: #{tpu_custom_call.1} parent=1 // loop_exit
      _
    %725 = vsyncpa [#allocation3], 1
    %s726 = scalar_lea.sflag [#allocation3], 1
    %727 = vsyncpa %s726, 1
    %728 = vsyncpa [#allocation4], 1
    %s729 = scalar_lea.sflag [#allocation4], 1
    %730 = vsyncpa %s729, 1

</llo_original>
